<compile_context>
chip_gen: v6e
topology: v6e:2x2x1
jax: 0.10.0
libtpu: 0.0.40
codegen_flags: <defaults>
</compile_context>

<pallas_src>
import functools
import math

import jax
import jax.numpy as jnp
from jax import lax
from jax.experimental import pallas as pl
from jax.experimental.pallas import tpu as pltpu


_COMPUTE_DTYPE = jnp.bfloat16
_INV_SQRT2 = 0.7071067811865476


def _round_up(a: int, b: int) -> int:
    return (a + b - 1) // b * b


@functools.lru_cache(maxsize=1)
def _vmem_capacity_bytes() -> int:
    """Per-core VMEM capacity (v5e/v6e: 128 MiB, v7x: 64 MiB)."""
    try:
        return int(pltpu.get_tpu_info().vmem_capacity_bytes)
    except Exception:  # conservative fallback (works on every generation)
        return 64 << 20


def _single_buffered_spec(block_shape, index_map):
    """Resident (constant index_map) operand: a single VMEM buffer suffices."""
    try:
        return pl.BlockSpec(block_shape, index_map, pipeline_mode=pl.Buffered(1))
    except Exception:  # older jax without pipeline_mode: fall back to default
        return pl.BlockSpec(block_shape, index_map)


def _gelu_exact(h):
    # Exact (erf) GELU in f32 — matches torch.nn.GELU() default numerics.
    return 0.5 * h * (1.0 + lax.erf(h * _INV_SQRT2))


# --------------------------------------------------------------------------
# Kernels
# --------------------------------------------------------------------------
def _ff_resident_kernel(x_ref, w1_ref, w2_ref, o_ref):
    # x_ref:  (tm, E_pad)     input-dtype token tile (cast to bf16 on the VPU)
    # w1_ref: (E_pad, H_pad)  bf16 W1^T, resident (single-buffered)
    # w2_ref: (H_pad, E_pad)  bf16 W2^T, resident (single-buffered)
    x = x_ref[...].astype(_COMPUTE_DTYPE)
    h = jnp.dot(x, w1_ref[...], preferred_element_type=jnp.float32)
    h = _gelu_exact(h)
    o = jnp.dot(h.astype(w2_ref.dtype), w2_ref[...],
                preferred_element_type=jnp.float32)
    # TODO(synk): Dropout(p=0.2) is a no-op in eval mode; training-mode dropout
    # (pltpu.prng_* masking) is not implemented here.
    o_ref[...] = o.astype(o_ref.dtype)


def _ff_hblock_kernel(x_ref, w1_ref, w2_ref, o_ref, acc_ref):
    # Grid: (token tiles [parallel], hidden chunks [arbitrary]).
    # x_ref:  (tm, E_pad); w1_ref: (E_pad, th); w2_ref: (th, E_pad)
    # acc_ref: (tm, E_pad) f32 accumulator, persistent across the H axis.
    k = pl.program_id(1)

    @pl.when(k == 0)
    def _():
        acc_ref[...] = jnp.zeros_like(acc_ref)

    x = x_ref[...].astype(_COMPUTE_DTYPE)
    h = jnp.dot(x, w1_ref[...], preferred_element_type=jnp.float32)
    h = _gelu_exact(h)  # elementwise in h -> chunking H is exact
    acc_ref[...] += jnp.dot(h.astype(w2_ref.dtype), w2_ref[...],
                            preferred_element_type=jnp.float32)

    @pl.when(k == pl.num_programs(1) - 1)
    def _():
        o_ref[...] = acc_ref[...].astype(o_ref.dtype)


# --------------------------------------------------------------------------
# Wrappers
# --------------------------------------------------------------------------
def prepare_weights(w1_t, w2_t):
    """Pad weights to lane-dense multiples of 128 and cast to bf16 ONCE.

    Hoisted out of the per-call path: avoids an extra f32-read + bf16-write
    HBM pass over both weight matrices on every forward call.
    w1_t: (n_embd, 4*n_embd) = W1^T, w2_t: (4*n_embd, n_embd) = W2^T.
    """
    E, H = w1_t.shape
    assert w2_t.shape == (H, E)
    E_pad, H_pad = _round_up(E, 128), _round_up(H, 128)
    w1p = jnp.pad(w1_t, ((0, E_pad - E), (0, H_pad - H))).astype(_COMPUTE_DTYPE)
    w2p = jnp.pad(w2_t, ((0, H_pad - H), (0, E_pad - E))).astype(_COMPUTE_DTYPE)
    return w1p, w2p


@functools.partial(jax.jit, static_argnames=("tm", "th", "force_h_block"))
def feed_forward(x, w1p, w2p, *, tm=None, th=512, force_h_block=False):
    """x: (B, T, n_embd); w1p/w2p: pre-padded bf16 weights from prepare_weights."""
    B, T, E = x.shape
    E_pad, H_pad = w1p.shape
    assert w2p.shape == (H_pad, E_pad)
    assert E_pad % 128 == 0 and H_pad % 128 == 0 and E_pad >= E

    M = B * T
    out_dtype = x.dtype
    x_isz = jnp.dtype(x.dtype).itemsize
    o_isz = jnp.dtype(out_dtype).itemsize

    vmem_cap = _vmem_capacity_bytes()
    vmem_budget = int(0.85 * vmem_cap)  # ~56 MiB on v7x, ~108 MiB on v5e/v6e

    # Token tile: bigger on 128-MiB parts (amortizes per-step pipeline overhead),
    # multiple of 16 (bf16 sublanes), clamped to the padded token count.
    if tm is None:
        tm = 512 if vmem_cap >= (96 << 20) else 256
    tm_eff = max(16, min(tm, _round_up(M, 16)))
    tm_eff = _round_up(tm_eff, 16)
    M_pad = _round_up(M, tm_eff)

    # Footprint of the resident-weight path (weights single-buffered).
    resident_need = (
        2 * E_pad * H_pad * 2                  # W1^T + W2^T, bf16, 1 buffer each
        + 2 * tm_eff * E_pad * x_isz           # double-buffered input tile
        + 2 * tm_eff * E_pad * o_isz           # double-buffered output tile
        + tm_eff * H_pad * (4 + 2))            # f32 hidden + bf16 copy

    use_h_block = force_h_block or (resident_need + (4 << 20) > vmem_budget)

    # Activation: pad only when needed (skip the extra HBM pass when aligned);
    # the f32->bf16 cast happens inside the kernel.
    x2d = x.reshape(M, E)
    if M_pad != M or E_pad != E:
        x2d = jnp.pad(x2d, ((0, M_pad - M), (0, E_pad - E)))

    if not use_h_block:
        grid = (M_pad // tm_eff,)
        in_specs = [
            pl.BlockSpec((tm_eff, E_pad), lambda i: (i, 0)),           # token tile
            _single_buffered_spec((E_pad, H_pad), lambda i: (0, 0)),   # full W1^T
            _single_buffered_spec((H_pad, E_pad), lambda i: (0, 0)),   # full W2^T
        ]
        out_spec = pl.BlockSpec((tm_eff, E_pad), lambda i: (i, 0))
        kernel = _ff_resident_kernel
        scratch = []
        dim_sem = ("parallel",)
        need = resident_need
    else:
        # H-blocked accumulator path: weight working set ~ th, not H.
        th_eff = min(_round_up(th, 128), H_pad)
        while H_pad % th_eff:
            th_eff -= 128
        grid = (M_pad // tm_eff, H_pad // th_eff)
        in_specs = [
            pl.BlockSpec((tm_eff, E_pad), lambda i, k: (i, 0)),
            pl.BlockSpec((E_pad, th_eff), lambda i, k: (0, k)),   # W1^T chunk
            pl.BlockSpec((th_eff, E_pad), lambda i, k: (k, 0)),   # W2^T chunk
        ]
        out_spec = pl.BlockSpec((tm_eff, E_pad), lambda i, k: (i, 0))
        kernel = _ff_hblock_kernel
        scratch = [pltpu.VMEM((tm_eff, E_pad), jnp.float32)]
        dim_sem = ("parallel", "arbitrary")
        need = (2 * 2 * E_pad * th_eff * 2       # double-buffered weight chunks
                + 2 * tm_eff * E_pad * x_isz
                + 2 * tm_eff * E_pad * o_isz
                + tm_eff * E_pad * 4             # f32 accumulator scratch
                + tm_eff * th_eff * (4 + 2))     # hidden chunk f32 + bf16

    vmem_limit = int(min(max(need + (4 << 20), 32 << 20), vmem_budget))

    cost = pl.CostEstimate(
        flops=4 * M_pad * E_pad * H_pad,
        transcendentals=M_pad * H_pad,
        bytes_accessed=(M_pad * E_pad * x_isz
                        + 2 * E_pad * H_pad * 2
                        + M_pad * E_pad * o_isz),
    )

    out2d = pl.pallas_call(
        kernel,
        out_shape=jax.ShapeDtypeStruct((M_pad, E_pad), out_dtype),
        grid_spec=pltpu.PrefetchScalarGridSpec(
            num_scalar_prefetch=0,
            grid=grid,
            in_specs=in_specs,
            out_specs=out_spec,
            scratch_shapes=scratch,
        ),
        compiler_params=pltpu.CompilerParams(
            dimension_semantics=dim_sem,
            vmem_limit_bytes=vmem_limit),
        cost_estimate=cost,
    )(x2d, w1p, w2p)
    return out2d[:M, :E].reshape(B, T, E)


# --------------------------------------------------------------------------
# References & self-test
# --------------------------------------------------------------------------
def _reference_f32(x, w1_t, w2_t):
    h = jnp.dot(x, w1_t)
    h = _gelu_exact(h)
    return jnp.dot(h, w2_t)


def _reference_bf16(x, w1_t, w2_t):
    # Mimics the kernel's bf16-operand / f32-accumulate path.
    xb = x.astype(jnp.bfloat16)
    h = jnp.dot(xb, w1_t.astype(jnp.bfloat16), preferred_element_type=jnp.float32)
    h = _gelu_exact(h)
    return jnp.dot(h.astype(jnp.bfloat16), w2_t.astype(jnp.bfloat16),
                   preferred_element_type=jnp.float32).astype(x.dtype)


def _make_inputs(key, B, T, E):
    H = 4 * E
    kx, k1, k2 = jax.random.split(key, 3)
    x = jax.random.normal(kx, (B, T, E), dtype=jnp.float32)
    # Torch nn.Linear stores weight as (out, in); the kernel takes (in, out).
    w1 = jax.random.uniform(k1, (H, E), jnp.float32,
                            -1.0 / math.sqrt(E), 1.0 / math.sqrt(E))
    w2 = jax.random.uniform(k2, (E, H), jnp.float32,
                            -1.0 / math.sqrt(H), 1.0 / math.sqrt(H))
    return x, w1.T, w2.T


if __name__ == "__main__":
    key0, key1 = jax.random.split(jax.random.PRNGKey(0))

    # Small shapes consistent with the module: batch=2, seq=8, n_embd=32.
    B, T, E = 2, 8, 32
    x, w1_t, w2_t = _make_inputs(key0, B, T, E)
    w1p, w2p = prepare_weights(w1_t, w2_t)

    out = jax.block_until_ready(feed_forward(x, w1p, w2p))
    assert out.shape == (B, T, E)
    assert jnp.allclose(out, _reference_bf16(x, w1_t, w2_t), atol=2e-3, rtol=2e-3), \
        "resident path: mismatch vs bf16-matmul reference"
    assert jnp.allclose(out, _reference_f32(x, w1_t, w2_t), atol=3e-2, rtol=3e-2), \
        "resident path: mismatch vs f32 reference"

    # Exercise the H-blocked accumulator path (the one picked automatically when
    # resident weights would not fit the per-core VMEM budget, e.g. v7x at large
    # n_embd) on a slightly wider toy shape so multiple H-chunks accumulate.
    xb, w1b_t, w2b_t = _make_inputs(key1, 2, 8, 256)
    w1bp, w2bp = prepare_weights(w1b_t, w2b_t)
    outb = jax.block_until_ready(
        feed_forward(xb, w1bp, w2bp, th=256, force_h_block=True))
    assert outb.shape == (2, 8, 256)
    assert jnp.allclose(outb, _reference_bf16(xb, w1b_t, w2b_t), atol=2e-3, rtol=2e-3), \
        "H-blocked path: mismatch vs bf16-matmul reference"
    assert jnp.allclose(outb, _reference_f32(xb, w1b_t, w2b_t), atol=3e-2, rtol=3e-2), \
        "H-blocked path: mismatch vs f32 reference"

    print("KERNEL_OK")
</pallas_src>

<mosaic_0001>
module attributes {stable_mosaic.version = 11 : i64} {
  func.func @_ff_resident_kernel(%arg0: i32, %arg1: memref<16x128xf32, #tpu.memory_space<vmem>>, %arg2: memref<128x128xbf16, #tpu.memory_space<vmem>>, %arg3: memref<128x128xbf16, #tpu.memory_space<vmem>>, %arg4: memref<16x128xf32, #tpu.memory_space<vmem>>) attributes {dimension_semantics = [#tpu.dimension_semantics<parallel>], iteration_bounds = array<i64: 1>, scalar_prefetch = 0 : i64, scratch_operands = 0 : i64, tpu.core_type = #tpu.core_type<tc>, window_params = [{transform_indices = @transform_0, window_bounds = array<i64: 16, 128>}, {pipeline_mode = #tpu.pipeline_mode<synchronous>, transform_indices = @transform_1, window_bounds = array<i64: 128, 128>}, {pipeline_mode = #tpu.pipeline_mode<synchronous>, transform_indices = @transform_2, window_bounds = array<i64: 128, 128>}, {transform_indices = @transform_3, window_bounds = array<i64: 16, 128>}]} {
    %c0 = arith.constant 0 : index
    %c0_0 = arith.constant 0 : index
    %0 = vector.load %arg1[%c0, %c0_0] : memref<16x128xf32, #tpu.memory_space<vmem>>, vector<16x128xf32>
    %1 = arith.truncf %0 : vector<16x128xf32> to vector<16x128xbf16>
    %c0_1 = arith.constant 0 : index
    %c0_2 = arith.constant 0 : index
    %2 = vector.load %arg2[%c0_1, %c0_2] : memref<128x128xbf16, #tpu.memory_space<vmem>>, vector<128x128xbf16>
    %cst = arith.constant dense<0.000000e+00> : vector<16x128xf32>
    %3 = tpu.matmul %1, %2, %cst {dimension_numbers = #tpu.dot_dimension_numbers<[1], [0], [0], [1], [0, 0, 1, 1], [], []>} : vector<16x128xbf16>, vector<128x128xbf16>, vector<16x128xf32> -> vector<16x128xf32>
    %cst_3 = arith.constant 5.000000e-01 : f32
    %4 = vector.broadcast %cst_3 : f32 to vector<16x128xf32>
    %5 = arith.mulf %4, %3 : vector<16x128xf32>
    %cst_4 = arith.constant 0.707106769 : f32
    %6 = vector.broadcast %cst_4 : f32 to vector<16x128xf32>
    %7 = arith.mulf %3, %6 : vector<16x128xf32>
    %8 = math.erf %7 : vector<16x128xf32>
    %cst_5 = arith.constant 1.000000e+00 : f32
    %9 = vector.broadcast %cst_5 : f32 to vector<16x128xf32>
    %10 = arith.addf %9, %8 : vector<16x128xf32>
    %11 = arith.mulf %5, %10 : vector<16x128xf32>
    %12 = arith.truncf %11 : vector<16x128xf32> to vector<16x128xbf16>
    %c0_6 = arith.constant 0 : index
    %c0_7 = arith.constant 0 : index
    %13 = vector.load %arg3[%c0_6, %c0_7] : memref<128x128xbf16, #tpu.memory_space<vmem>>, vector<128x128xbf16>
    %cst_8 = arith.constant dense<0.000000e+00> : vector<16x128xf32>
    %14 = tpu.matmul %12, %13, %cst_8 {dimension_numbers = #tpu.dot_dimension_numbers<[1], [0], [0], [1], [0, 0, 1, 1], [], []>} : vector<16x128xbf16>, vector<128x128xbf16>, vector<16x128xf32> -> vector<16x128xf32>
    %c0_9 = arith.constant 0 : index
    %c0_10 = arith.constant 0 : index
    %15 = vector.load %arg4[%c0_9, %c0_10] : memref<16x128xf32, #tpu.memory_space<vmem>>, vector<16x128xf32>
    tpu.vector_store %arg4[%c0_9, %c0_10], %14 {strides = array<i32>} : memref<16x128xf32, #tpu.memory_space<vmem>>, vector<16x128xf32>,
    return
  }
  func.func @transform_0(%arg0: i32) -> (i32, i32) {
    %c0_i32 = arith.constant 0 : i32
    %c0_i32_0 = arith.constant 0 : i32
    return %arg0, %c0_i32 : i32, i32
  }
  func.func @transform_1(%arg0: i32) -> (i32, i32) {
    %c0_i32 = arith.constant 0 : i32
    %c0_i32_0 = arith.constant 0 : i32
    %c0_i32_1 = arith.constant 0 : i32
    return %c0_i32, %c0_i32_0 : i32, i32
  }
  func.func @transform_2(%arg0: i32) -> (i32, i32) {
    %c0_i32 = arith.constant 0 : i32
    %c0_i32_0 = arith.constant 0 : i32
    %c0_i32_1 = arith.constant 0 : i32
    return %c0_i32, %c0_i32_0 : i32, i32
  }
  func.func @transform_3(%arg0: i32) -> (i32, i32) {
    %c0_i32 = arith.constant 0 : i32
    %c0_i32_0 = arith.constant 0 : i32
    return %arg0, %c0_i32 : i32, i32
  }
}

</mosaic_0001>

<llo_original>
// kernel: feed_forward.1
$region0: #{feed_forward.1}
  #allocation0 [shape = 'u32[]', space=smem, size = 0x4, offset = 0x4, fixed_abs, tag = 'smem constant byte address 0x4 - core index']
  #allocation1 [shape = 'u32[144,128]{1,0:T(1,128)}', space=vmem, size = 0x12000, scoped, tag = 'internal scratch']
  %s0 = inlined_call_operand.vmem [shape: f32[16,128], index: 0, kind: input, shape index: {}]
  %s1 = inlined_call_operand.hbm [shape: bf16[128,128], index: 1, kind: input, shape index: {}]
  %s2 = inlined_call_operand.hbm [shape: bf16[128,128], index: 2, kind: input, shape index: {}]
  %s3 = inlined_call_operand.vmem [shape: f32[16,128], index: 3, kind: output, shape index: {}]
  %s4 = sld [smem:[#allocation0]]
  $region30: #{feed_forward.1} parent=0
    _
  %s6 = ssub.s32 1, %s4
  %s7 = scalar_select 0, %s6, %s4
  $region1: #{feed_forward.1} parent=0
    #allocation2 [shape = 'u8[32768]{0}', space=vmem, size = 0x8000, scoped, tag = 'input window, operand 1, single buffered']
    #allocation3 [shape = 's32[1]{0}', space=sflag, size = 0x4, scoped, tag = 'scoped memory for feed_forward.1']
    #allocation4 [shape = 'u8[32768]{0}', space=vmem, size = 0x8000, scoped, tag = 'input window, operand 2, single buffered']
    #allocation5 [shape = 's32[1]{0}', space=sflag, size = 0x4, scoped, tag = 'scoped memory for feed_forward.1']
    %8 = vsyncpa [#allocation3], 0
    %9 = vsyncpa [#allocation5], 0
    // Predicated region
    $region2: #{feed_forward.1} parent=1 // pred_check
      _
    $region3: #{feed_forward.1} parent=1 // pred_check_branch
      %11 = sbr.rel (0) target = $region5
    $region4: #{feed_forward.1} parent=1 // pred_region
      _
    $region5: #{feed_forward.1} parent=1 // pred_fallthru
      _
    // Predicated region
    $region6: #{feed_forward.1} parent=1 // pred_check
      _
    $region7: #{feed_forward.1} parent=1 // pred_check_branch
      %13 = sbr.rel (0) target = $region9
    $region8: #{feed_forward.1} parent=1 // pred_region
      %s15 = ssub.s32 1024, 1024
      %16 = vsyncadd [#allocation3], %s15
      %s17 = sshll.u32 [#allocation2], 4
      %s18 = int_to_ptr.vmem [resolvable:$true] %s17
      %23 = dma.hbm_to_vmem [thread:$0]  %s1, 1024, %s18, [#allocation3], 64, 64, 4
    $region9: #{feed_forward.1} parent=1 // pred_fallthru
      _
    // Predicated region
    $region10: #{feed_forward.1} parent=1 // pred_check
      _
    $region11: #{feed_forward.1} parent=1 // pred_check_branch
      %25 = sbr.rel (0) target = $region13
    $region12: #{feed_forward.1} parent=1 // pred_region
      %s27 = ssub.s32 1024, 1024
      %28 = vsyncadd [#allocation5], %s27
      %s29 = sshll.u32 [#allocation4], 4
      %s30 = int_to_ptr.vmem [resolvable:$true] %s29
      %35 = dma.hbm_to_vmem [thread:$0]  %s2, 1024, %s30, [#allocation5], 64, 64, 4
    $region13: #{feed_forward.1} parent=1 // pred_fallthru
      _
    // Predicated region
    $region14: #{feed_forward.1} parent=1 // pred_check
      _
    $region15: #{feed_forward.1} parent=1 // pred_check_branch
      %37 = sbr.rel (0) target = $region17
    $region16: #{feed_forward.1} parent=1 // pred_region
      %38 = dma.done [#allocation3], 1024
    $region17: #{feed_forward.1} parent=1 // pred_fallthru
      _
    // Predicated region
    $region18: #{feed_forward.1} parent=1 // pred_check
      _
    $region19: #{feed_forward.1} parent=1 // pred_check_branch
      %40 = sbr.rel (0) target = $region21
    $region20: #{feed_forward.1} parent=1 // pred_region
      %41 = dma.done [#allocation5], 1024
    $region21: #{feed_forward.1} parent=1 // pred_fallthru
      _
    %v43 = vld [vmem:[%s0] sm:$0xff]
    %v44 = vld [vmem:[%s0 + $0x8] sm:$0xff]
    %v45 = vpack.c.bf16 %v44, %v43
    %v46 = vld [vmem:[#allocation2] sm:$0xf]
    %v47 = vld [vmem:[#allocation2 + $0x4] sm:$0xf]
    %v48 = vld [vmem:[#allocation2 + $0x8] sm:$0xf]
    %v49 = vld [vmem:[#allocation2 + $0xc] sm:$0xf]
    %v50 = vld [vmem:[#allocation2 + $0x10] sm:$0xf]
    %v51 = vld [vmem:[#allocation2 + $0x14] sm:$0xf]
    %v52 = vld [vmem:[#allocation2 + $0x18] sm:$0xf]
    %v53 = vld [vmem:[#allocation2 + $0x1c] sm:$0xf]
    %v54 = vld [vmem:[#allocation2 + $0x20] sm:$0xf]
    %v55 = vld [vmem:[#allocation2 + $0x24] sm:$0xf]
    %v56 = vld [vmem:[#allocation2 + $0x28] sm:$0xf]
    %v57 = vld [vmem:[#allocation2 + $0x2c] sm:$0xf]
    %v58 = vld [vmem:[#allocation2 + $0x30] sm:$0xf]
    %v59 = vld [vmem:[#allocation2 + $0x34] sm:$0xf]
    %v60 = vld [vmem:[#allocation2 + $0x38] sm:$0xf]
    %v61 = vld [vmem:[#allocation2 + $0x3c] sm:$0xf]
    %v78 = vunpack.c.l.b16 %v46
    %v79 = vunpack.c.l.b16 %v47
    %v80 = vunpack.c.l.b16 %v48
    %v81 = vunpack.c.l.b16 %v49
    %v82 = vunpack.c.l.b16 %v50
    %v83 = vunpack.c.l.b16 %v51
    %v84 = vunpack.c.l.b16 %v52
    %v85 = vunpack.c.l.b16 %v53
    %v86 = vunpack.c.l.b16 %v54
    %v87 = vunpack.c.l.b16 %v55
    %v88 = vunpack.c.l.b16 %v56
    %v89 = vunpack.c.l.b16 %v57
    %v90 = vunpack.c.l.b16 %v58
    %v91 = vunpack.c.l.b16 %v59
    %v92 = vunpack.c.l.b16 %v60
    %v93 = vunpack.c.l.b16 %v61
    %v94 = vpack.c.b16 %v79, %v78
    %v95 = vpack.c.b16 %v81, %v80
    %v96 = vpack.c.b16 %v83, %v82
    %v97 = vpack.c.b16 %v85, %v84
    %v98 = vpack.c.b16 %v87, %v86
    %v99 = vpack.c.b16 %v89, %v88
    %v100 = vpack.c.b16 %v91, %v90
    %v101 = vpack.c.b16 %v93, %v92
    %110 = vmatprep.subr.bf16.mxu0 0
    %111 = vmatpush1.bf16.msra.mxu0 %v101
    %112 = vmatprep.subr.bf16.mxu0 0
    %113 = vmatpush1.bf16.msra.mxu0 %v100
    %114 = vmatprep.subr.bf16.mxu0 0
    %115 = vmatpush1.bf16.msra.mxu0 %v99
    %116 = vmatprep.subr.bf16.mxu0 0
    %117 = vmatpush1.bf16.msra.mxu0 %v98
    %118 = vmatprep.subr.bf16.mxu0 0
    %119 = vmatpush1.bf16.msra.mxu0 %v97
    %120 = vmatprep.subr.bf16.mxu0 0
    %121 = vmatpush1.bf16.msra.mxu0 %v96
    %122 = vmatprep.subr.bf16.mxu0 0
    %123 = vmatpush1.bf16.msra.mxu0 %v95
    %124 = vmatprep.subr.bf16.mxu0 0
    %125 = vmatpush1.bf16.msra.mxu0 %v94
    %126 = vmatprep.subr.bf16.mxu0 0
    %127 = vmatpush2.bf16.msra.mxu0 0
    %128 = vmatprep.subr.bf16.mxu0 0
    %129 = vmatpush2.bf16.msra.mxu0 0
    %130 = vmatprep.subr.bf16.mxu0 0
    %131 = vmatpush2.bf16.msra.mxu0 0
    %132 = vmatprep.subr.bf16.mxu0 0
    %133 = vmatpush2.bf16.msra.mxu0 0
    %134 = vmatprep.subr.bf16.mxu0 0
    %135 = vmatpush2.bf16.msra.mxu0 0
    %136 = vmatprep.subr.bf16.mxu0 0
    %137 = vmatpush2.bf16.msra.mxu0 0
    %138 = vmatprep.subr.bf16.mxu0 0
    %139 = vmatpush2.bf16.msra.mxu0 0
    %140 = vmatprep.subr.bf16.mxu0 0
    %141 = vmatpush2.bf16.msra.mxu0 0
    %142 = vmatprep.mubr.bf16.mxu0 0
    %143 = vmatmul.mubr.bf16.gmra.mxu0 %v45
    %v144 = vpop.f32.mrf.mxu0
    %v145 = vadd.f32 0.0, %v144
    %v146 = vpop.f32.mrf.mxu0
    %v147 = vpop.f32.mrf.mxu0
    %v148 = vadd.f32 0.0, %v147
    %v149 = vpop.f32.mrf.mxu0
    %150 = vdwg.mxu0
    %v151 = vmul.f32 %v145, 0.5
    %v152 = vmul.f32 %v148, 0.5
    %v153 = vmul.f32 %v145, 0.70710677
    %v154 = vmul.f32 %v148, 0.70710677
    %v155 = verf.f32.pop %v153
    %v156 = verf.f32.pop %v154
    %v157 = vadd.f32 %v155, 1.0
    %v158 = vadd.f32 %v156, 1.0
    %v159 = vmul.f32 %v151, %v157
    %v160 = vmul.f32 %v152, %v158
    %v161 = vpack.c.bf16 %v160, %v159
    %v162 = vld [vmem:[#allocation4] sm:$0xf]
    %v163 = vld [vmem:[#allocation4 + $0x4] sm:$0xf]
    %v164 = vld [vmem:[#allocation4 + $0x8] sm:$0xf]
    %v165 = vld [vmem:[#allocation4 + $0xc] sm:$0xf]
    %v166 = vld [vmem:[#allocation4 + $0x10] sm:$0xf]
    %v167 = vld [vmem:[#allocation4 + $0x14] sm:$0xf]
    %v168 = vld [vmem:[#allocation4 + $0x18] sm:$0xf]
    %v169 = vld [vmem:[#allocation4 + $0x1c] sm:$0xf]
    %v170 = vld [vmem:[#allocation4 + $0x20] sm:$0xf]
    %v171 = vld [vmem:[#allocation4 + $0x24] sm:$0xf]
    %v172 = vld [vmem:[#allocation4 + $0x28] sm:$0xf]
    %v173 = vld [vmem:[#allocation4 + $0x2c] sm:$0xf]
    %v174 = vld [vmem:[#allocation4 + $0x30] sm:$0xf]
    %v175 = vld [vmem:[#allocation4 + $0x34] sm:$0xf]
    %v176 = vld [vmem:[#allocation4 + $0x38] sm:$0xf]
    %v177 = vld [vmem:[#allocation4 + $0x3c] sm:$0xf]
    %v194 = vunpack.c.l.b16 %v162
    %v195 = vunpack.c.l.b16 %v163
    %v196 = vunpack.c.l.b16 %v164
    %v197 = vunpack.c.l.b16 %v165
    %v198 = vunpack.c.l.b16 %v166
    %v199 = vunpack.c.l.b16 %v167
    %v200 = vunpack.c.l.b16 %v168
    %v201 = vunpack.c.l.b16 %v169
    %v202 = vunpack.c.l.b16 %v170
    %v203 = vunpack.c.l.b16 %v171
    %v204 = vunpack.c.l.b16 %v172
    %v205 = vunpack.c.l.b16 %v173
    %v206 = vunpack.c.l.b16 %v174
    %v207 = vunpack.c.l.b16 %v175
    %v208 = vunpack.c.l.b16 %v176
    %v209 = vunpack.c.l.b16 %v177
    %v210 = vpack.c.b16 %v195, %v194
    %v211 = vpack.c.b16 %v197, %v196
    %v212 = vpack.c.b16 %v199, %v198
    %v213 = vpack.c.b16 %v201, %v200
    %v214 = vpack.c.b16 %v203, %v202
    %v215 = vpack.c.b16 %v205, %v204
    %v216 = vpack.c.b16 %v207, %v206
    %v217 = vpack.c.b16 %v209, %v208
    %226 = vmatprep.subr.bf16.mxu0 0
    %227 = vmatpush1.bf16.msra.mxu0 %v217
    %228 = vmatprep.subr.bf16.mxu0 0
    %229 = vmatpush1.bf16.msra.mxu0 %v216
    %230 = vmatprep.subr.bf16.mxu0 0
    %231 = vmatpush1.bf16.msra.mxu0 %v215
    %232 = vmatprep.subr.bf16.mxu0 0
    %233 = vmatpush1.bf16.msra.mxu0 %v214
    %234 = vmatprep.subr.bf16.mxu0 0
    %235 = vmatpush1.bf16.msra.mxu0 %v213
    %236 = vmatprep.subr.bf16.mxu0 0
    %237 = vmatpush1.bf16.msra.mxu0 %v212
    %238 = vmatprep.subr.bf16.mxu0 0
    %239 = vmatpush1.bf16.msra.mxu0 %v211
    %240 = vmatprep.subr.bf16.mxu0 0
    %241 = vmatpush1.bf16.msra.mxu0 %v210
    %242 = vmatprep.subr.bf16.mxu0 0
    %243 = vmatpush2.bf16.msra.mxu0 0
    %244 = vmatprep.subr.bf16.mxu0 0
    %245 = vmatpush2.bf16.msra.mxu0 0
    %246 = vmatprep.subr.bf16.mxu0 0
    %247 = vmatpush2.bf16.msra.mxu0 0
    %248 = vmatprep.subr.bf16.mxu0 0
    %249 = vmatpush2.bf16.msra.mxu0 0
    %250 = vmatprep.subr.bf16.mxu0 0
    %251 = vmatpush2.bf16.msra.mxu0 0
    %252 = vmatprep.subr.bf16.mxu0 0
    %253 = vmatpush2.bf16.msra.mxu0 0
    %254 = vmatprep.subr.bf16.mxu0 0
    %255 = vmatpush2.bf16.msra.mxu0 0
    %256 = vmatprep.subr.bf16.mxu0 0
    %257 = vmatpush2.bf16.msra.mxu0 0
    %258 = vmatprep.mubr.bf16.mxu0 0
    %259 = vmatmul.mubr.bf16.gmra.mxu0 %v161
    %v260 = vpop.f32.mrf.mxu0
    %v261 = vadd.f32 0.0, %v260
    %v262 = vpop.f32.mrf.mxu0
    %v263 = vpop.f32.mrf.mxu0
    %v264 = vadd.f32 0.0, %v263
    %v265 = vpop.f32.mrf.mxu0
    %266 = vdwg.mxu0
    %267 = vst [vmem:[%s3] sm:$0xff] %v261
    %268 = vst [vmem:[%s3 + $0x8] sm:$0xff] %v264
    // Predicated region
    $region22: #{feed_forward.1} parent=1 // pred_check
      _
    $region23: #{feed_forward.1} parent=1 // pred_check_branch
      %270 = sbr.rel (0) target = $region25
    $region24: #{feed_forward.1} parent=1 // pred_region
      _
    $region25: #{feed_forward.1} parent=1 // pred_fallthru
      _
    // Predicated region
    $region26: #{feed_forward.1} parent=1 // pred_check
      _
    $region27: #{feed_forward.1} parent=1 // pred_check_branch
      %272 = sbr.rel (0) target = $region29
    $region28: #{feed_forward.1} parent=1 // pred_region
      _
    $region29: #{feed_forward.1} parent=1 // pred_fallthru
      _
    %273 = vsyncpa [#allocation3], 1
    %274 = vsyncpa [#allocation5], 1

</llo_original>
